<compile_context>
chip_gen: v7x
topology: tpu7x:2x2x1
jax: 0.10.0
libtpu: 0.0.40
codegen_flags: <defaults>
</compile_context>

<pallas_src>
import functools

import jax
import jax.numpy as jnp
from jax.experimental import pallas as pl
from jax.experimental.pallas import tpu as pltpu


def _round_up(n, m):
    return ((n + m - 1) // m) * m


def _pad_to(a, shape):
    pads = [(0, t - s) for s, t in zip(a.shape, shape)]
    if any(p for _, p in pads):
        return jnp.pad(a, pads)
    return a


def _apply_output_activation(out, *, loss_type, d_out_valid):
    """loss_type -> output activation, applied on (padded) f32 logits."""
    lt = (loss_type or "").lower()
    if lt in ("bce", "binary", "binary_crossentropy", "bce_logits"):
        return jax.nn.sigmoid(out)
    if lt in ("ce", "crossentropy", "cross_entropy", "nll", "categorical"):
        # Mask padded lanes so they contribute nothing to the softmax denom.
        lane = jax.lax.broadcasted_iota(jnp.int32, out.shape, dimension=1)
        out = jnp.where(lane < d_out_valid, out, jnp.float32(-1e30))
        return jax.nn.softmax(out, axis=-1)
    # mse / quantile / huber / regression -> identity
    return out


def _mlp_kernel(x_ref, w_in_ref, b_in_ref, w_hid_ref, b_hid_ref,
                w_out_ref, b_out_ref, o_ref, *, n_layer, loss_type,
                d_out_valid):
    cdt = w_in_ref.dtype  # MXU operand dtype (f32 or bf16); accumulate in f32.

    # Input projection: (bm, d_in) @ (d_in, d_h) + (1, d_h)
    h = jnp.dot(x_ref[...], w_in_ref[...],
                preferred_element_type=jnp.float32) + b_in_ref[...]

    # Hidden stack: Linear -> Tanh -> Dropout (identity in eval mode).
    for i in range(n_layer):  # n_layer is static -> unrolled
        h = jnp.dot(h.astype(cdt), w_hid_ref[i],
                    preferred_element_type=jnp.float32) + b_hid_ref[i]
        h = jnp.tanh(h)

    # Output projection + output activation (lane-dense padded width).
    out = jnp.dot(h.astype(cdt), w_out_ref[...],
                  preferred_element_type=jnp.float32) + b_out_ref[...]
    out = _apply_output_activation(out, loss_type=loss_type,
                                   d_out_valid=d_out_valid)
    o_ref[...] = out.astype(o_ref.dtype)


def mlp_forward(x, params, *, n_layer, loss_type, block_m=128,
                lane_multiple=128, compute_dtype=jnp.float32):
    """x: (B, d_input).  params: dict from init_params (unpadded shapes)."""
    B, d_in = x.shape
    d_hidden = params["w_in"].shape[1]
    d_output = params["w_out"].shape[1]

    # Lane-dense padded feature dims (exact under zero padding).
    d_in_p = _round_up(d_in, lane_multiple)
    d_h_p = _round_up(d_hidden, lane_multiple)
    d_out_p = _round_up(d_output, lane_multiple)

    # Batch tiling: large tiles, multiple of 8 sublanes; pad batch to fit.
    bm = _round_up(min(block_m, _round_up(B, 8)), 8)
    B_p = _round_up(B, bm)

    itemsize = jnp.dtype(compute_dtype).itemsize
    x_p = _pad_to(x, (B_p, d_in_p)).astype(compute_dtype)
    w_in = _pad_to(params["w_in"], (d_in_p, d_h_p)).astype(compute_dtype)
    b_in = _pad_to(params["b_in"], (1, d_h_p)).astype(jnp.float32)
    w_hid = _pad_to(params["w_hid"], (n_layer, d_h_p, d_h_p)).astype(compute_dtype)
    b_hid = _pad_to(params["b_hid"], (n_layer, 1, d_h_p)).astype(jnp.float32)
    w_out = _pad_to(params["w_out"], (d_h_p, d_out_p)).astype(compute_dtype)
    b_out = _pad_to(params["b_out"], (1, d_out_p)).astype(jnp.float32)

    # Explicit VMEM budget (default scoped limit is well below physical).
    weight_bytes = (d_in_p * d_h_p + n_layer * d_h_p * d_h_p
                    + d_h_p * d_out_p) * itemsize
    bias_bytes = ((n_layer + 1) * d_h_p + d_out_p) * 4
    tile_bytes = bm * d_in_p * itemsize + bm * d_out_p * 4
    scratch_bytes = 4 * bm * d_h_p * 4  # headroom for f32 intermediates
    est = 2 * (weight_bytes + bias_bytes + tile_bytes) + scratch_bytes
    vmem_limit_bytes = int(min(max(2 * est, 32 * 2**20), 96 * 2**20))

    kernel = functools.partial(
        _mlp_kernel, n_layer=n_layer, loss_type=loss_type,
        d_out_valid=d_output)

    grid = (B_p // bm,)
    # Weights/biases: constant index_map -> DMA'd once, resident across grid.
    full = lambda shape: pl.BlockSpec(shape, lambda i: (0,) * len(shape))

    out = pl.pallas_call(
        kernel,
        out_shape=jax.ShapeDtypeStruct((B_p, d_out_p), jnp.float32),
        grid=grid,
        in_specs=[
            pl.BlockSpec((bm, d_in_p), lambda i: (i, 0)),   # x tile
            full((d_in_p, d_h_p)),                          # w_in
            full((1, d_h_p)),                               # b_in
            full((n_layer, d_h_p, d_h_p)),                  # w_hid
            full((n_layer, 1, d_h_p)),                      # b_hid
            full((d_h_p, d_out_p)),                         # w_out
            full((1, d_out_p)),                             # b_out
        ],
        out_specs=pl.BlockSpec((bm, d_out_p), lambda i: (i, 0)),
        compiler_params=pltpu.CompilerParams(
            dimension_semantics=("parallel",),
            vmem_limit_bytes=vmem_limit_bytes),
    )(x_p, w_in, b_in, w_hid, b_hid, w_out, b_out)

    return out[:B, :d_output]


def init_params(key, d_input, d_output, d_hidden, n_layer, dtype=jnp.float32):
    """Deterministic init mirroring nn.Linear's U(-1/sqrt(fan_in), 1/sqrt(fan_in)).

    Weights are stored (in_features, out_features), i.e. transposed vs PyTorch.
    """
    keys = jax.random.split(key, 6)

    def uniform(k, shape, fan_in):
        bound = 1.0 / jnp.sqrt(fan_in)
        return jax.random.uniform(k, shape, dtype, -bound, bound)

    return {
        "w_in": uniform(keys[0], (d_input, d_hidden), d_input),
        "b_in": uniform(keys[1], (1, d_hidden), d_input),
        "w_hid": uniform(keys[2], (n_layer, d_hidden, d_hidden), d_hidden),
        "b_hid": uniform(keys[3], (n_layer, 1, d_hidden), d_hidden),
        "w_out": uniform(keys[4], (d_hidden, d_output), d_hidden),
        "b_out": uniform(keys[5], (1, d_output), d_hidden),
    }


def mlp_reference(x, params, *, n_layer, loss_type,
                  compute_dtype=jnp.float32):
    """Pure-JAX reference (same dtype policy as the kernel) for checks."""
    cdt = compute_dtype
    h = jnp.dot(x.astype(cdt), params["w_in"].astype(cdt),
                preferred_element_type=jnp.float32) + params["b_in"]
    for i in range(n_layer):
        h = jnp.dot(h.astype(cdt), params["w_hid"][i].astype(cdt),
                    preferred_element_type=jnp.float32) + params["b_hid"][i]
        h = jnp.tanh(h)
    out = jnp.dot(h.astype(cdt), params["w_out"].astype(cdt),
                  preferred_element_type=jnp.float32) + params["b_out"]
    return _apply_output_activation(out, loss_type=loss_type,
                                    d_out_valid=out.shape[-1])


if __name__ == "__main__":
    # Small module dims (per the spec), but a batch big enough to show the
    # 128-row tiling and a 2-step grid (splits across the 2 TCs on v7x).
    d_input, d_output, d_hidden, n_layer = 16, 8, 32, 2
    dropout, loss_type = 0.1, "mse"
    batch = 256

    key = jax.random.PRNGKey(0)
    kx, kp = jax.random.split(key)
    x = jax.random.normal(kx, (batch, d_input), jnp.float32)
    params = init_params(kp, d_input, d_output, d_hidden, n_layer)

    # --- f32 path (tight correctness check) ---
    out = mlp_forward(x, params, n_layer=n_layer, loss_type=loss_type,
                      block_m=128, compute_dtype=jnp.float32)
    out = jax.block_until_ready(out)
    ref = mlp_reference(x, params, n_layer=n_layer, loss_type=loss_type)
    assert out.shape == (batch, d_output)
    assert jnp.allclose(out, ref, atol=1e-5, rtol=1e-5)

    # --- bf16 weights/activations with f32 accumulation (v6e/v7x path) ---
    out_bf = mlp_forward(x, params, n_layer=n_layer, loss_type=loss_type,
                         block_m=128, compute_dtype=jnp.bfloat16)
    out_bf = jax.block_until_ready(out_bf)
    ref_bf = mlp_reference(x, params, n_layer=n_layer, loss_type=loss_type,
                           compute_dtype=jnp.bfloat16)
    assert jnp.allclose(out_bf, ref_bf, atol=1e-2, rtol=1e-2)

    # --- softmax output path (exercises padded-lane masking) ---
    out_sm = mlp_forward(x, params, n_layer=n_layer, loss_type="crossentropy")
    out_sm = jax.block_until_ready(out_sm)
    ref_sm = mlp_reference(x, params, n_layer=n_layer,
                           loss_type="crossentropy")
    assert jnp.allclose(out_sm, ref_sm, atol=1e-5, rtol=1e-5)

    print("KERNEL_OK")
</pallas_src>

<mosaic_0001>
module attributes {stable_mosaic.version = 11 : i64} {
  func.func @_mlp_kernel(%arg0: i32, %arg1: memref<128x128xf32, #tpu.memory_space<vmem>>, %arg2: memref<128x128xf32, #tpu.memory_space<vmem>>, %arg3: memref<1x128xf32, #tpu.memory_space<vmem>>, %arg4: memref<2x128x128xf32, #tpu.memory_space<vmem>>, %arg5: memref<2x1x128xf32, #tpu.memory_space<vmem>>, %arg6: memref<128x128xf32, #tpu.memory_space<vmem>>, %arg7: memref<1x128xf32, #tpu.memory_space<vmem>>, %arg8: memref<128x128xf32, #tpu.memory_space<vmem>>) attributes {dimension_semantics = [#tpu.dimension_semantics<parallel>], iteration_bounds = array<i64: 2>, scalar_prefetch = 0 : i64, scratch_operands = 0 : i64, tpu.core_type = #tpu.core_type<tc>, window_params = [{transform_indices = @transform_0, window_bounds = array<i64: 128, 128>}, {pipeline_mode = #tpu.pipeline_mode<synchronous>, transform_indices = @transform_1, window_bounds = array<i64: 128, 128>}, {pipeline_mode = #tpu.pipeline_mode<synchronous>, transform_indices = @transform_2, window_bounds = array<i64: 1, 128>}, {pipeline_mode = #tpu.pipeline_mode<synchronous>, transform_indices = @transform_3, window_bounds = array<i64: 2, 128, 128>}, {pipeline_mode = #tpu.pipeline_mode<synchronous>, transform_indices = @transform_4, window_bounds = array<i64: 2, 1, 128>}, {pipeline_mode = #tpu.pipeline_mode<synchronous>, transform_indices = @transform_5, window_bounds = array<i64: 128, 128>}, {pipeline_mode = #tpu.pipeline_mode<synchronous>, transform_indices = @transform_6, window_bounds = array<i64: 1, 128>}, {transform_indices = @transform_7, window_bounds = array<i64: 128, 128>}]} {
    %c0 = arith.constant 0 : index
    %c0_0 = arith.constant 0 : index
    %0 = vector.load %arg1[%c0, %c0_0] : memref<128x128xf32, #tpu.memory_space<vmem>>, vector<128x128xf32>
    %c0_1 = arith.constant 0 : index
    %c0_2 = arith.constant 0 : index
    %1 = vector.load %arg2[%c0_1, %c0_2] : memref<128x128xf32, #tpu.memory_space<vmem>>, vector<128x128xf32>
    %cst = arith.constant dense<0.000000e+00> : vector<128x128xf32>
    %2 = tpu.matmul %0, %1, %cst {dimension_numbers = #tpu.dot_dimension_numbers<[1], [0], [0], [1], [0, 0, 1, 1], [], []>} : vector<128x128xf32>, vector<128x128xf32>, vector<128x128xf32> -> vector<128x128xf32>
    %c0_3 = arith.constant 0 : index
    %c0_4 = arith.constant 0 : index
    %3 = vector.load %arg3[%c0_3, %c0_4] : memref<1x128xf32, #tpu.memory_space<vmem>>, vector<1x128xf32>
    %4 = vector.broadcast %3 : vector<1x128xf32> to vector<128x128xf32>
    %5 = arith.addf %2, %4 : vector<128x128xf32>
    %c0_5 = arith.constant 0 : index
    %c0_6 = arith.constant 0 : index
    %c0_7 = arith.constant 0 : index
    %6 = vector.load %arg4[%c0_5, %c0_6, %c0_7] : memref<2x128x128xf32, #tpu.memory_space<vmem>>, vector<1x128x128xf32>
    %7 = vector.shape_cast %6 : vector<1x128x128xf32> to vector<128x128xf32>
    %cst_8 = arith.constant dense<0.000000e+00> : vector<128x128xf32>
    %8 = tpu.matmul %5, %7, %cst_8 {dimension_numbers = #tpu.dot_dimension_numbers<[1], [0], [0], [1], [0, 0, 1, 1], [], []>} : vector<128x128xf32>, vector<128x128xf32>, vector<128x128xf32> -> vector<128x128xf32>
    %c0_9 = arith.constant 0 : index
    %c0_10 = arith.constant 0 : index
    %c0_11 = arith.constant 0 : index
    %9 = vector.load %arg5[%c0_9, %c0_10, %c0_11] : memref<2x1x128xf32, #tpu.memory_space<vmem>>, vector<1x1x128xf32>
    %10 = vector.shape_cast %9 : vector<1x1x128xf32> to vector<1x128xf32>
    %11 = vector.broadcast %10 : vector<1x128xf32> to vector<128x128xf32>
    %12 = arith.addf %8, %11 : vector<128x128xf32>
    %13 = math.tanh %12 : vector<128x128xf32>
    %c1 = arith.constant 1 : index
    %c0_12 = arith.constant 0 : index
    %c0_13 = arith.constant 0 : index
    %14 = vector.load %arg4[%c1, %c0_12, %c0_13] : memref<2x128x128xf32, #tpu.memory_space<vmem>>, vector<1x128x128xf32>
    %15 = vector.shape_cast %14 : vector<1x128x128xf32> to vector<128x128xf32>
    %cst_14 = arith.constant dense<0.000000e+00> : vector<128x128xf32>
    %16 = tpu.matmul %13, %15, %cst_14 {dimension_numbers = #tpu.dot_dimension_numbers<[1], [0], [0], [1], [0, 0, 1, 1], [], []>} : vector<128x128xf32>, vector<128x128xf32>, vector<128x128xf32> -> vector<128x128xf32>
    %c1_15 = arith.constant 1 : index
    %c0_16 = arith.constant 0 : index
    %c0_17 = arith.constant 0 : index
    %17 = vector.load %arg5[%c1_15, %c0_16, %c0_17] : memref<2x1x128xf32, #tpu.memory_space<vmem>>, vector<1x1x128xf32>
    %18 = vector.shape_cast %17 : vector<1x1x128xf32> to vector<1x128xf32>
    %19 = vector.broadcast %18 : vector<1x128xf32> to vector<128x128xf32>
    %20 = arith.addf %16, %19 : vector<128x128xf32>
    %21 = math.tanh %20 : vector<128x128xf32>
    %c0_18 = arith.constant 0 : index
    %c0_19 = arith.constant 0 : index
    %22 = vector.load %arg6[%c0_18, %c0_19] : memref<128x128xf32, #tpu.memory_space<vmem>>, vector<128x128xf32>
    %cst_20 = arith.constant dense<0.000000e+00> : vector<128x128xf32>
    %23 = tpu.matmul %21, %22, %cst_20 {dimension_numbers = #tpu.dot_dimension_numbers<[1], [0], [0], [1], [0, 0, 1, 1], [], []>} : vector<128x128xf32>, vector<128x128xf32>, vector<128x128xf32> -> vector<128x128xf32>
    %c0_21 = arith.constant 0 : index
    %c0_22 = arith.constant 0 : index
    %24 = vector.load %arg7[%c0_21, %c0_22] : memref<1x128xf32, #tpu.memory_space<vmem>>, vector<1x128xf32>
    %25 = vector.broadcast %24 : vector<1x128xf32> to vector<128x128xf32>
    %26 = arith.addf %23, %25 : vector<128x128xf32>
    %c0_23 = arith.constant 0 : index
    %c0_24 = arith.constant 0 : index
    %27 = vector.load %arg8[%c0_23, %c0_24] : memref<128x128xf32, #tpu.memory_space<vmem>>, vector<128x128xf32>
    tpu.vector_store %arg8[%c0_23, %c0_24], %26 {strides = array<i32>} : memref<128x128xf32, #tpu.memory_space<vmem>>, vector<128x128xf32>,
    return
  }
  func.func @transform_0(%arg0: i32) -> (i32, i32) {
    %c0_i32 = arith.constant 0 : i32
    %c0_i32_0 = arith.constant 0 : i32
    return %arg0, %c0_i32 : i32, i32
  }
  func.func @transform_1(%arg0: i32) -> (i32, i32) {
    %c0_i32 = arith.constant 0 : i32
    %c0_i32_0 = arith.constant 0 : i32
    %c0_i32_1 = arith.constant 0 : i32
    return %c0_i32, %c0_i32_0 : i32, i32
  }
  func.func @transform_2(%arg0: i32) -> (i32, i32) {
    %c0_i32 = arith.constant 0 : i32
    %c0_i32_0 = arith.constant 0 : i32
    %c0_i32_1 = arith.constant 0 : i32
    return %c0_i32, %c0_i32_0 : i32, i32
  }
  func.func @transform_3(%arg0: i32) -> (i32, i32, i32) {
    %c0_i32 = arith.constant 0 : i32
    %c0_i32_0 = arith.constant 0 : i32
    %c0_i32_1 = arith.constant 0 : i32
    %c0_i32_2 = arith.constant 0 : i32
    return %c0_i32, %c0_i32_0, %c0_i32_1 : i32, i32, i32
  }
  func.func @transform_4(%arg0: i32) -> (i32, i32, i32) {
    %c0_i32 = arith.constant 0 : i32
    %c0_i32_0 = arith.constant 0 : i32
    %c0_i32_1 = arith.constant 0 : i32
    %c0_i32_2 = arith.constant 0 : i32
    return %c0_i32, %c0_i32_0, %c0_i32_1 : i32, i32, i32
  }
  func.func @transform_5(%arg0: i32) -> (i32, i32) {
    %c0_i32 = arith.constant 0 : i32
    %c0_i32_0 = arith.constant 0 : i32
    %c0_i32_1 = arith.constant 0 : i32
    return %c0_i32, %c0_i32_0 : i32, i32
  }
  func.func @transform_6(%arg0: i32) -> (i32, i32) {
    %c0_i32 = arith.constant 0 : i32
    %c0_i32_0 = arith.constant 0 : i32
    %c0_i32_1 = arith.constant 0 : i32
    return %c0_i32, %c0_i32_0 : i32, i32
  }
  func.func @transform_7(%arg0: i32) -> (i32, i32) {
    %c0_i32 = arith.constant 0 : i32
    %c0_i32_0 = arith.constant 0 : i32
    return %arg0, %c0_i32 : i32, i32
  }
}

</mosaic_0001>

<llo_original>
// kernel: tpu_custom_call.1
$region0: #{tpu_custom_call.1}
  #allocation0 [shape = 'u32[]', space=smem, size = 0x4, offset = 0x4, fixed_abs, tag = 'smem constant byte address 0x4 - core index']
  #allocation1 [shape = 'u32[144,128]{1,0:T(1,128)}', space=vmem, size = 0x12000, scoped, tag = 'internal scratch']
  %s0 = inlined_call_operand.hbm [shape: f32[256,128], index: 0, kind: input, shape index: {}]
  %s1 = inlined_call_operand.hbm [shape: f32[128,128], index: 1, kind: input, shape index: {}]
  %s2 = inlined_call_operand.vmem [shape: f32[1,128], index: 2, kind: input, shape index: {}]
  %s3 = inlined_call_operand.hbm [shape: f32[2,128,128], index: 3, kind: input, shape index: {}]
  %s4 = inlined_call_operand.vmem [shape: f32[2,1,128], index: 4, kind: input, shape index: {}]
  %s5 = inlined_call_operand.hbm [shape: f32[128,128], index: 5, kind: input, shape index: {}]
  %s6 = inlined_call_operand.vmem [shape: f32[1,128], index: 6, kind: input, shape index: {}]
  %s7 = inlined_call_operand.hbm [shape: f32[256,128], index: 7, kind: output, shape index: {}]
  %s8 = sld [smem:[#allocation0]]
  $region77: #{tpu_custom_call.1} parent=0
    _
  %s10 = ssub.s32 1, %s8
  %s11 = scalar_select 0, %s10, %s8
  $region1: #{tpu_custom_call.1} parent=0
    #allocation2 [shape = 'u8[131072]{0}', space=vmem, size = 0x20000, scoped, tag = 'input window, operand 0']
    #allocation3 [shape = 's32[2]{0}', space=sflag, size = 0x8, scoped, tag = 'scoped memory for tpu_custom_call.1']
    #allocation4 [shape = 's32[2]{0}', space=sflag, size = 0x8, scoped, tag = 'scoped memory for tpu_custom_call.1']
    #allocation5 [shape = 'u8[65536]{0}', space=vmem, size = 0x10000, scoped, tag = 'input window, operand 1, single buffered']
    #allocation6 [shape = 's32[1]{0}', space=sflag, size = 0x4, scoped, tag = 'scoped memory for tpu_custom_call.1']
    #allocation7 [shape = 'u8[131072]{0}', space=vmem, size = 0x20000, scoped, tag = 'input window, operand 3, single buffered']
    #allocation8 [shape = 'u8[65536]{0}', space=vmem, size = 0x10000, scoped, tag = 'input window, operand 5, single buffered']
    #allocation9 [shape = 's32[1]{0}', space=sflag, size = 0x4, scoped, tag = 'scoped memory for tpu_custom_call.1']
    #allocation10 [shape = 'u8[131072]{0}', space=vmem, size = 0x20000, scoped, tag = 'output window, operand 0']
    %12 = vsyncpa [#allocation3], 0
    %s13 = scalar_lea.sflag [#allocation3], 1
    %14 = vsyncpa %s13, 0
    %15 = vsyncpa [#allocation6], 0
    %16 = vsyncpa [#allocation9], 0
    %17 = vsyncpa [#allocation4], 0
    %s18 = scalar_lea.sflag [#allocation4], 1
    %19 = vsyncpa %s18, 0
    loop: start=0, step=1, limit=4
    $region2: #{tpu_custom_call.1} parent=1 // loop_pre_header
      _
    $region3: #{tpu_custom_call.1} parent=1 // loop_header
      %s21 = sphi 0, %s25
      %p22 = scmp.ge.s32.totalorder %s21, 4
      %s31 = sphi 0, %s33
      %s34 = sphi 0, %s31
      %s35 = sphi 0, %s34
      %s51 = sphi 0, %s35
      %s55 = sphi 0, %s55
      %s57 = sphi 0, %s55
      %s58 = sphi 0, %s57
      %s72 = sphi 0, %s58
      %s76 = sphi 0, %s76
      %s78 = sphi 0, %s76
      %s79 = sphi 0, %s78
      %s93 = sphi 0, %s79
      %s97 = sphi 0, %s97
      %s99 = sphi 0, %s97
      %s100 = sphi 0, %s99
      %s114 = sphi 0, %s100
      %s118 = sphi 0, %s118
      %s120 = sphi 0, %s118
      %s121 = sphi 0, %s120
      %s135 = sphi 0, %s121
      %s139 = sphi 0, %s139
      %s141 = sphi 0, %s139
      %s142 = sphi 0, %s141
      %s156 = sphi 0, %s142
      %s160 = sphi 0, %s160
      %s162 = sphi 0, %s160
      %s163 = sphi 0, %s162
      %s177 = sphi 0, %s163
      %s183 = sphi 0, %s185
      %s186 = sphi 0, %s183
      %s187 = sphi 0, %s186
      %s203 = sphi 0, %s187
    $region4: #{tpu_custom_call.1} parent=1 // loop_header_branch
      %24 = sbr.rel (%p22) target = $region8
    $region5: #{tpu_custom_call.1} parent=1 // loop_body
      %s26 = ssub.s32 %s21, 1
      %s27 = ssub.s32 %s21, 2
      %s28 = sadd.s32 %s21, 1
      %s29 = ssub.s32 %s21, %s28
      %p30 = scmp.eq.s32.totalorder %s29, 0
      %s32 = sadd.s32 %s31, 1
      %s33 = scalar_select %p30, %s31, %s32
      %p36 = pneg %p30
      %p37 = scmp.eq.s32.totalorder %s21, 1
      %p38 = por %p36, %p37
      %p39 = scmp.ne.s32.totalorder %s31, %s34
      %p40 = scmp.eq.s32.totalorder %s21, 0
      %p41 = por %p39, %p40
      %p42 = scmp.ne.s32.totalorder %s31, %s34
      %p43 = scmp.eq.s32.totalorder %s26, 1
      %p44 = por %p42, %p43
      %p45 = scmp.ne.s32.totalorder %s34, %s35
      %p46 = scmp.eq.s32.totalorder %s26, 0
      %p47 = por %p45, %p46
      %p48 = scmp.ne.s32.totalorder %s34, %s35
      %p49 = scmp.eq.s32.totalorder %s27, 1
      %p50 = por %p48, %p49
      %p52 = scmp.ne.s32.totalorder %s35, %s51
      %p53 = scmp.eq.s32.totalorder %s27, 0
      %p54 = por %p52, %p53
      %s56 = sadd.s32 %s55, 1
      %p59 = scmp.eq.s32.totalorder %s21, 1
      %p60 = scmp.ne.s32.totalorder %s55, %s57
      %p61 = scmp.eq.s32.totalorder %s21, 0
      %p62 = por %p60, %p61
      %p63 = scmp.ne.s32.totalorder %s55, %s57
      %p64 = scmp.eq.s32.totalorder %s26, 1
      %p65 = por %p63, %p64
      %p66 = scmp.ne.s32.totalorder %s57, %s58
      %p67 = scmp.eq.s32.totalorder %s26, 0
      %p68 = por %p66, %p67
      %p69 = scmp.ne.s32.totalorder %s57, %s58
      %p70 = scmp.eq.s32.totalorder %s27, 1
      %p71 = por %p69, %p70
      %p73 = scmp.ne.s32.totalorder %s58, %s72
      %p74 = scmp.eq.s32.totalorder %s27, 0
      %p75 = por %p73, %p74
      %s77 = sadd.s32 %s76, 1
      %p80 = scmp.eq.s32.totalorder %s21, 1
      %p81 = scmp.ne.s32.totalorder %s76, %s78
      %p82 = scmp.eq.s32.totalorder %s21, 0
      %p83 = por %p81, %p82
      %p84 = scmp.ne.s32.totalorder %s76, %s78
      %p85 = scmp.eq.s32.totalorder %s26, 1
      %p86 = por %p84, %p85
      %p87 = scmp.ne.s32.totalorder %s78, %s79
      %p88 = scmp.eq.s32.totalorder %s26, 0
      %p89 = por %p87, %p88
      %p90 = scmp.ne.s32.totalorder %s78, %s79
      %p91 = scmp.eq.s32.totalorder %s27, 1
      %p92 = por %p90, %p91
      %p94 = scmp.ne.s32.totalorder %s79, %s93
      %p95 = scmp.eq.s32.totalorder %s27, 0
      %p96 = por %p94, %p95
      %s98 = sadd.s32 %s97, 1
      %p101 = scmp.eq.s32.totalorder %s21, 1
      %p102 = scmp.ne.s32.totalorder %s97, %s99
      %p103 = scmp.eq.s32.totalorder %s21, 0
      %p104 = por %p102, %p103
      %p105 = scmp.ne.s32.totalorder %s97, %s99
      %p106 = scmp.eq.s32.totalorder %s26, 1
      %p107 = por %p105, %p106
      %p108 = scmp.ne.s32.totalorder %s99, %s100
      %p109 = scmp.eq.s32.totalorder %s26, 0
      %p110 = por %p108, %p109
      %p111 = scmp.ne.s32.totalorder %s99, %s100
      %p112 = scmp.eq.s32.totalorder %s27, 1
      %p113 = por %p111, %p112
      %p115 = scmp.ne.s32.totalorder %s100, %s114
      %p116 = scmp.eq.s32.totalorder %s27, 0
      %p117 = por %p115, %p116
      %s119 = sadd.s32 %s118, 1
      %p122 = scmp.eq.s32.totalorder %s21, 1
      %p123 = scmp.ne.s32.totalorder %s118, %s120
      %p124 = scmp.eq.s32.totalorder %s21, 0
      %p125 = por %p123, %p124
      %p126 = scmp.ne.s32.totalorder %s118, %s120
      %p127 = scmp.eq.s32.totalorder %s26, 1
      %p128 = por %p126, %p127
      %p129 = scmp.ne.s32.totalorder %s120, %s121
      %p130 = scmp.eq.s32.totalorder %s26, 0
      %p131 = por %p129, %p130
      %p132 = scmp.ne.s32.totalorder %s120, %s121
      %p133 = scmp.eq.s32.totalorder %s27, 1
      %p134 = por %p132, %p133
      %p136 = scmp.ne.s32.totalorder %s121, %s135
      %p137 = scmp.eq.s32.totalorder %s27, 0
      %p138 = por %p136, %p137
      %s140 = sadd.s32 %s139, 1
      %p143 = scmp.eq.s32.totalorder %s21, 1
      %p144 = scmp.ne.s32.totalorder %s139, %s141
      %p145 = scmp.eq.s32.totalorder %s21, 0
      %p146 = por %p144, %p145
      %p147 = scmp.ne.s32.totalorder %s139, %s141
      %p148 = scmp.eq.s32.totalorder %s26, 1
      %p149 = por %p147, %p148
      %p150 = scmp.ne.s32.totalorder %s141, %s142
      %p151 = scmp.eq.s32.totalorder %s26, 0
      %p152 = por %p150, %p151
      %p153 = scmp.ne.s32.totalorder %s141, %s142
      %p154 = scmp.eq.s32.totalorder %s27, 1
      %p155 = por %p153, %p154
      %p157 = scmp.ne.s32.totalorder %s142, %s156
      %p158 = scmp.eq.s32.totalorder %s27, 0
      %p159 = por %p157, %p158
      %s161 = sadd.s32 %s160, 1
      %p164 = scmp.eq.s32.totalorder %s21, 1
      %p165 = scmp.ne.s32.totalorder %s160, %s162
      %p166 = scmp.eq.s32.totalorder %s21, 0
      %p167 = por %p165, %p166
      %p168 = scmp.ne.s32.totalorder %s160, %s162
      %p169 = scmp.eq.s32.totalorder %s26, 1
      %p170 = por %p168, %p169
      %p171 = scmp.ne.s32.totalorder %s162, %s163
      %p172 = scmp.eq.s32.totalorder %s26, 0
      %p173 = por %p171, %p172
      %p174 = scmp.ne.s32.totalorder %s162, %s163
      %p175 = scmp.eq.s32.totalorder %s27, 1
      %p176 = por %p174, %p175
      %p178 = scmp.ne.s32.totalorder %s163, %s177
      %p179 = scmp.eq.s32.totalorder %s27, 0
      %p180 = por %p178, %p179
      %s181 = ssub.s32 %s21, %s28
      %p182 = scmp.eq.s32.totalorder %s181, 0
      %s184 = sadd.s32 %s183, 1
      %s185 = scalar_select %p182, %s183, %s184
      %p188 = pneg %p182
      %p189 = scmp.eq.s32.totalorder %s21, 1
      %p190 = por %p188, %p189
      %p191 = scmp.ne.s32.totalorder %s183, %s186
      %p192 = scmp.eq.s32.totalorder %s21, 0
      %p193 = por %p191, %p192
      %p194 = scmp.ne.s32.totalorder %s183, %s186
      %p195 = scmp.eq.s32.totalorder %s26, 1
      %p196 = por %p194, %p195
      %p197 = scmp.ne.s32.totalorder %s186, %s187
      %p198 = scmp.eq.s32.totalorder %s26, 0
      %p199 = por %p197, %p198
      %p200 = scmp.ne.s32.totalorder %s186, %s187
      %p201 = scmp.eq.s32.totalorder %s27, 1
      %p202 = por %p200, %p201
      %p204 = scmp.ne.s32.totalorder %s187, %s203
      %p205 = scmp.eq.s32.totalorder %s27, 0
      %p206 = por %p204, %p205
      %p207 = scmp.le.s32.totalorder 1, %s21
      %p208 = scmp.lt.s32.totalorder %s21, 3
      %p209 = pnand %p207, %p208
      %p210 = pneg %p209
      // Predicated region
      $region9: #{tpu_custom_call.1} parent=5 // pred_check
        _
      $region10: #{tpu_custom_call.1} parent=5 // pred_check_branch
        %212 = sbr.rel (%p209) target = $region12
      $region11: #{tpu_custom_call.1} parent=5 // pred_region
        %s213 = ssub.s32 %s21, 1
        // Predicated region
        $region13: #{tpu_custom_call.1} parent=11 // pred_check
          %p214 = pneg %p68
        $region14: #{tpu_custom_call.1} parent=11 // pred_check_branch
          %216 = sbr.rel (%p214) target = $region16
        $region15: #{tpu_custom_call.1} parent=11 // pred_region
          %s218 = ssub.s32 2048, 2048
          %219 = vsyncadd [#allocation6], %s218
          %s220 = sshll.u32 [#allocation5], 4
          %s221 = int_to_ptr.vmem [resolvable:$true] %s220
          %226 = dma.hbm_to_vmem [thread:$0]  %s1, 2048, %s221, [#allocation6], 128, 128, 8
        $region16: #{tpu_custom_call.1} parent=11 // pred_fallthru
          _
        // Predicated region
        $region17: #{tpu_custom_call.1} parent=11 // pred_check
          %p227 = pneg %p89
        $region18: #{tpu_custom_call.1} parent=11 // pred_check_branch
          %229 = sbr.rel (%p227) target = $region20
        $region19: #{tpu_custom_call.1} parent=11 // pred_region
          _
        $region20: #{tpu_custom_call.1} parent=11 // pred_fallthru
          _
        // Predicated region
        $region21: #{tpu_custom_call.1} parent=11 // pred_check
          %p230 = pneg %p110
        $region22: #{tpu_custom_call.1} parent=11 // pred_check_branch
          %232 = sbr.rel (%p230) target = $region24
        $region23: #{tpu_custom_call.1} parent=11 // pred_region
          %s234 = ssub.s32 4096, 4096
          %235 = vsyncadd [#allocation6], %s234
          %s236 = sshll.u32 [#allocation7], 4
          %s237 = int_to_ptr.vmem [resolvable:$true] %s236
          %242 = dma.hbm_to_vmem [thread:$0]  %s3, 4096, %s237, [#allocation6], 128, 128, 8
        $region24: #{tpu_custom_call.1} parent=11 // pred_fallthru
          _
        // Predicated region
        $region25: #{tpu_custom_call.1} parent=11 // pred_check
          %p243 = pneg %p131
        $region26: #{tpu_custom_call.1} parent=11 // pred_check_branch
          %245 = sbr.rel (%p243) target = $region28
        $region27: #{tpu_custom_call.1} parent=11 // pred_region
          _
        $region28: #{tpu_custom_call.1} parent=11 // pred_fallthru
          _
        // Predicated region
        $region29: #{tpu_custom_call.1} parent=11 // pred_check
          %p246 = pneg %p152
        $region30: #{tpu_custom_call.1} parent=11 // pred_check_branch
          %248 = sbr.rel (%p246) target = $region32
        $region31: #{tpu_custom_call.1} parent=11 // pred_region
          %s250 = ssub.s32 2048, 2048
          %251 = vsyncadd [#allocation9], %s250
          %s252 = sshll.u32 [#allocation8], 4
          %s253 = int_to_ptr.vmem [resolvable:$true] %s252
          %258 = dma.hbm_to_vmem [thread:$0]  %s5, 2048, %s253, [#allocation9], 128, 128, 8
        $region32: #{tpu_custom_call.1} parent=11 // pred_fallthru
          _
        // Predicated region
        $region33: #{tpu_custom_call.1} parent=11 // pred_check
          %p259 = pneg %p173
        $region34: #{tpu_custom_call.1} parent=11 // pred_check_branch
          %261 = sbr.rel (%p259) target = $region36
        $region35: #{tpu_custom_call.1} parent=11 // pred_region
          _
        $region36: #{tpu_custom_call.1} parent=11 // pred_fallthru
          _
      $region12: #{tpu_custom_call.1} parent=5 // pred_fallthru
        _
      %p262 = scmp.lt.s32.totalorder %s21, 2
      // Predicated region
      $region37: #{tpu_custom_call.1} parent=5 // pred_check
        %p263 = pneg %p262
      $region38: #{tpu_custom_call.1} parent=5 // pred_check_branch
        %265 = sbr.rel (%p263) target = $region40
      $region39: #{tpu_custom_call.1} parent=5 // pred_region
        // Predicated region
        $region41: #{tpu_custom_call.1} parent=39 // pred_check
          %p266 = pneg %p41
        $region42: #{tpu_custom_call.1} parent=39 // pred_check_branch
          %268 = sbr.rel (%p266) target = $region44
        $region43: #{tpu_custom_call.1} parent=39 // pred_region
          %s269 = sand.u32 %s31, 1
          %s270 = scalar_lea.sflag [#allocation3], %s269
          %s271 = sand.u32 %s31, 1
          %s272 = smul.addr %s271, 128
          %s273 = scalar_lea.vmem [#allocation2], %s272
          %s274 = smul.u32 16, %s21
          %s276 = ssub.s32 2048, 2048
          %277 = vsyncadd %s270, %s276
          %s278 = smul.addr %s274, 128
          %s279 = scalar_lea.hbm %s0, %s278
          %s280 = sshll.u32 %s273, 4
          %s281 = int_to_ptr.vmem [resolvable:$true] %s280
          %286 = dma.hbm_to_vmem [thread:$0]  %s279, 2048, %s281, %s270, 128, 128, 8
        $region44: #{tpu_custom_call.1} parent=39 // pred_fallthru
          _
      $region40: #{tpu_custom_call.1} parent=5 // pred_fallthru
        _
      %p287 = scmp.le.s32.totalorder 1, %s21
      %p288 = scmp.lt.s32.totalorder %s21, 3
      %p289 = pnand %p287, %p288
      %p290 = pneg %p289
      // Predicated region
      $region45: #{tpu_custom_call.1} parent=5 // pred_check
        _
      $region46: #{tpu_custom_call.1} parent=5 // pred_check_branch
        %292 = sbr.rel (%p289) target = $region48
      $region47: #{tpu_custom_call.1} parent=5 // pred_region
        %s293 = ssub.s32 %s21, 1
        %s294 = sand.u32 %s34, 1
        %s295 = scalar_lea.sflag [#allocation3], %s294
        %s296 = sand.u32 %s34, 1
        %s297 = smul.addr %s296, 128
        %s298 = scalar_lea.vmem [#allocation2], %s297
        // Predicated region
        $region49: #{tpu_custom_call.1} parent=47 // pred_check
          %p299 = pneg %p47
        $region50: #{tpu_custom_call.1} parent=47 // pred_check_branch
          %301 = sbr.rel (%p299) target = $region52
        $region51: #{tpu_custom_call.1} parent=47 // pred_region
          %302 = dma.done %s295, 2048
        $region52: #{tpu_custom_call.1} parent=47 // pred_fallthru
          _
        // Predicated region
        $region53: #{tpu_custom_call.1} parent=47 // pred_check
          %p303 = pneg %p68
        $region54: #{tpu_custom_call.1} parent=47 // pred_check_branch
          %305 = sbr.rel (%p303) target = $region56
        $region55: #{tpu_custom_call.1} parent=47 // pred_region
          %306 = dma.done [#allocation6], 2048
        $region56: #{tpu_custom_call.1} parent=47 // pred_fallthru
          _
        // Predicated region
        $region57: #{tpu_custom_call.1} parent=47 // pred_check
          %p307 = pneg %p110
        $region58: #{tpu_custom_call.1} parent=47 // pred_check_branch
          %309 = sbr.rel (%p307) target = $region60
        $region59: #{tpu_custom_call.1} parent=47 // pred_region
          %310 = dma.done [#allocation6], 4096
        $region60: #{tpu_custom_call.1} parent=47 // pred_fallthru
          _
        // Predicated region
        $region61: #{tpu_custom_call.1} parent=47 // pred_check
          %p311 = pneg %p152
        $region62: #{tpu_custom_call.1} parent=47 // pred_check_branch
          %313 = sbr.rel (%p311) target = $region64
        $region63: #{tpu_custom_call.1} parent=47 // pred_region
          %314 = dma.done [#allocation9], 2048
        $region64: #{tpu_custom_call.1} parent=47 // pred_fallthru
          _
        %s315 = sand.u32 %s34, 1
        %s316 = scalar_lea.sflag [#allocation3], %s315
        %s317 = sand.u32 %s34, 1
        %s318 = smul.addr %s317, 128
        %s319 = scalar_lea.vmem [#allocation2], %s318
        %p320 = pneg %p47
        %p321 = pneg %p44
        %p322 = pneg %p68
        %p323 = pneg %p65
        %p324 = pneg %p89
        %p325 = pneg %p86
        %p326 = pneg %p110
        %p327 = pneg %p107
        %p328 = pneg %p131
        %p329 = pneg %p128
        %p330 = pneg %p152
        %p331 = pneg %p149
        %p332 = pneg %p173
        %p333 = pneg %p170
        %p334 = pneg %p199
        %p335 = pneg %p196
        %s336 = sand.u32 %s186, 1
        %s337 = scalar_lea.sflag [#allocation4], %s336
        %s338 = sand.u32 %s186, 1
        %s339 = smul.addr %s338, 128
        %s340 = scalar_lea.vmem [#allocation10], %s339
        %s341 = smul.u32 16, %s26
        %s342 = smul.u32 16, %s26
        %v343 = vld [vmem:[%s298] sm:$0xff]
        %v344 = vld [vmem:[%s298 + $0x8] sm:$0xff]
        %v345 = vld [vmem:[%s298 + $0x10] sm:$0xff]
        %v346 = vld [vmem:[%s298 + $0x18] sm:$0xff]
        %v347 = vld [vmem:[%s298 + $0x20] sm:$0xff]
        %v348 = vld [vmem:[%s298 + $0x28] sm:$0xff]
        %v349 = vld [vmem:[%s298 + $0x30] sm:$0xff]
        %v350 = vld [vmem:[%s298 + $0x38] sm:$0xff]
        %v351 = vld [vmem:[%s298 + $0x40] sm:$0xff]
        %v352 = vld [vmem:[%s298 + $0x48] sm:$0xff]
        %v353 = vld [vmem:[%s298 + $0x50] sm:$0xff]
        %v354 = vld [vmem:[%s298 + $0x58] sm:$0xff]
        %v355 = vld [vmem:[%s298 + $0x60] sm:$0xff]
        %v356 = vld [vmem:[%s298 + $0x68] sm:$0xff]
        %v357 = vld [vmem:[%s298 + $0x70] sm:$0xff]
        %v358 = vld [vmem:[%s298 + $0x78] sm:$0xff]
        %v359 = vld [vmem:[#allocation5] sm:$0xff]
        %v360 = vld [vmem:[#allocation5 + $0x8] sm:$0xff]
        %v361 = vld [vmem:[#allocation5 + $0x10] sm:$0xff]
        %v362 = vld [vmem:[#allocation5 + $0x18] sm:$0xff]
        %v363 = vld [vmem:[#allocation5 + $0x20] sm:$0xff]
        %v364 = vld [vmem:[#allocation5 + $0x28] sm:$0xff]
        %v365 = vld [vmem:[#allocation5 + $0x30] sm:$0xff]
        %v366 = vld [vmem:[#allocation5 + $0x38] sm:$0xff]
        %v367 = vld [vmem:[#allocation5 + $0x40] sm:$0xff]
        %v368 = vld [vmem:[#allocation5 + $0x48] sm:$0xff]
        %v369 = vld [vmem:[#allocation5 + $0x50] sm:$0xff]
        %v370 = vld [vmem:[#allocation5 + $0x58] sm:$0xff]
        %v371 = vld [vmem:[#allocation5 + $0x60] sm:$0xff]
        %v372 = vld [vmem:[#allocation5 + $0x68] sm:$0xff]
        %v373 = vld [vmem:[#allocation5 + $0x70] sm:$0xff]
        %v374 = vld [vmem:[#allocation5 + $0x78] sm:$0xff]
        %v375 = vld [vmem:[%s2] sm:$0x1]
        %v377 = vlaneseq
        %v378 = vshrl.u32 %v377, 7
        %v379 = vsub.s32 0, %v378
        %v380 = vrot.slane %v375, %v379
        %382 = vmatprep.subr.mxu0 0.0
        %383 = vmatpush1.msra.mxu0 %v359
        %384 = vmatprep.subr.mxu0 0.0
        %385 = vmatpush1.msra.mxu0 %v360
        %386 = vmatprep.subr.mxu0 0.0
        %387 = vmatpush1.msra.mxu0 %v361
        %388 = vmatprep.subr.mxu0 0.0
        %389 = vmatpush1.msra.mxu0 %v362
        %390 = vmatprep.subr.mxu0 0.0
        %391 = vmatpush1.msra.mxu0 %v363
        %392 = vmatprep.subr.mxu0 0.0
        %393 = vmatpush1.msra.mxu0 %v364
        %394 = vmatprep.subr.mxu0 0.0
        %395 = vmatpush1.msra.mxu0 %v365
        %396 = vmatprep.subr.mxu0 0.0
        %397 = vmatpush1.msra.mxu0 %v366
        %398 = vmatprep.subr.mxu0 0.0
        %399 = vmatpush1.msra.mxu0 %v367
        %400 = vmatprep.subr.mxu0 0.0
        %401 = vmatpush1.msra.mxu0 %v368
        %402 = vmatprep.subr.mxu0 0.0
        %403 = vmatpush1.msra.mxu0 %v369
        %404 = vmatprep.subr.mxu0 0.0
        %405 = vmatpush1.msra.mxu0 %v370
        %406 = vmatprep.subr.mxu0 0.0
        %407 = vmatpush1.msra.mxu0 %v371
        %408 = vmatprep.subr.mxu0 0.0
        %409 = vmatpush1.msra.mxu0 %v372
        %410 = vmatprep.subr.mxu0 0.0
        %411 = vmatpush1.msra.mxu0 %v373
        %412 = vmatprep.subr.mxu0 0.0
        %413 = vmatpush1.msra.mxu0 %v374
        %414 = vmatprep.subr.mxu0 0.0
        %415 = vmatpush1.msra.mxu0 0.0
        %416 = vmatprep.subr.mxu0 0.0
        %417 = vmatpush1.msra.mxu0 0.0
        %418 = vmatprep.subr.mxu0 0.0
        %419 = vmatpush1.msra.mxu0 0.0
        %420 = vmatprep.subr.mxu0 0.0
        %421 = vmatpush1.msra.mxu0 0.0
        %422 = vmatprep.subr.mxu0 0.0
        %423 = vmatpush1.msra.mxu0 0.0
        %424 = vmatprep.subr.mxu0 0.0
        %425 = vmatpush1.msra.mxu0 0.0
        %426 = vmatprep.subr.mxu0 0.0
        %427 = vmatpush1.msra.mxu0 0.0
        %428 = vmatprep.subr.mxu0 0.0
        %429 = vmatpush1.msra.mxu0 0.0
        %430 = vmatprep.subr.mxu0 0.0
        %431 = vmatpush1.msra.mxu0 0.0
        %432 = vmatprep.subr.mxu0 0.0
        %433 = vmatpush1.msra.mxu0 0.0
        %434 = vmatprep.subr.mxu0 0.0
        %435 = vmatpush1.msra.mxu0 0.0
        %436 = vmatprep.subr.mxu0 0.0
        %437 = vmatpush1.msra.mxu0 0.0
        %438 = vmatprep.subr.mxu0 0.0
        %439 = vmatpush1.msra.mxu0 0.0
        %440 = vmatprep.subr.mxu0 0.0
        %441 = vmatpush1.msra.mxu0 0.0
        %442 = vmatprep.subr.mxu0 0.0
        %443 = vmatpush1.msra.mxu0 0.0
        %444 = vmatprep.subr.mxu0 0.0
        %445 = vmatpush1.msra.mxu0 0.0
        %446 = vmatprep.mubr.f32.mxu0 0.0
        %447 = vmatmul.mubr.f32.gmra.mrb[0].mxu0 %v343
        %v448 = vpop.f32.mrb[0].mxu0
        %v449 = vadd.f32 %v380, %v448
        %v450 = vpop.f32.mrb[0].mxu0
        %451 = vmatprep.mubr.f32.mxu0 0.0
        %452 = vmatmul.mubr.f32.gmra.mrb[0].mxu0 %v344
        %v453 = vpop.f32.mrb[0].mxu0
        %v454 = vadd.f32 %v380, %v453
        %v455 = vpop.f32.mrb[0].mxu0
        %456 = vmatprep.mubr.f32.mxu0 0.0
        %457 = vmatmul.mubr.f32.gmra.mrb[0].mxu0 %v345
        %v458 = vpop.f32.mrb[0].mxu0
        %v459 = vadd.f32 %v380, %v458
        %v460 = vpop.f32.mrb[0].mxu0
        %461 = vmatprep.mubr.f32.mxu0 0.0
        %462 = vmatmul.mubr.f32.gmra.mrb[0].mxu0 %v346
        %v463 = vpop.f32.mrb[0].mxu0
        %v464 = vadd.f32 %v380, %v463
        %v465 = vpop.f32.mrb[0].mxu0
        %466 = vmatprep.mubr.f32.mxu0 0.0
        %467 = vmatmul.mubr.f32.gmra.mrb[0].mxu0 %v347
        %v468 = vpop.f32.mrb[0].mxu0
        %v469 = vadd.f32 %v380, %v468
        %v470 = vpop.f32.mrb[0].mxu0
        %471 = vmatprep.mubr.f32.mxu0 0.0
        %472 = vmatmul.mubr.f32.gmra.mrb[0].mxu0 %v348
        %v473 = vpop.f32.mrb[0].mxu0
        %v474 = vadd.f32 %v380, %v473
        %v475 = vpop.f32.mrb[0].mxu0
        %476 = vmatprep.mubr.f32.mxu0 0.0
        %477 = vmatmul.mubr.f32.gmra.mrb[0].mxu0 %v349
        %v478 = vpop.f32.mrb[0].mxu0
        %v479 = vadd.f32 %v380, %v478
        %v480 = vpop.f32.mrb[0].mxu0
        %481 = vmatprep.mubr.f32.mxu0 0.0
        %482 = vmatmul.mubr.f32.gmra.mrb[0].mxu0 %v350
        %v483 = vpop.f32.mrb[0].mxu0
        %v484 = vadd.f32 %v380, %v483
        %v485 = vpop.f32.mrb[0].mxu0
        %486 = vmatprep.mubr.f32.mxu0 0.0
        %487 = vmatmul.mubr.f32.gmra.mrb[0].mxu0 %v351
        %v488 = vpop.f32.mrb[0].mxu0
        %v489 = vadd.f32 %v380, %v488
        %v490 = vpop.f32.mrb[0].mxu0
        %491 = vmatprep.mubr.f32.mxu0 0.0
        %492 = vmatmul.mubr.f32.gmra.mrb[0].mxu0 %v352
        %v493 = vpop.f32.mrb[0].mxu0
        %v494 = vadd.f32 %v380, %v493
        %v495 = vpop.f32.mrb[0].mxu0
        %496 = vmatprep.mubr.f32.mxu0 0.0
        %497 = vmatmul.mubr.f32.gmra.mrb[0].mxu0 %v353
        %v498 = vpop.f32.mrb[0].mxu0
        %v499 = vadd.f32 %v380, %v498
        %v500 = vpop.f32.mrb[0].mxu0
        %501 = vmatprep.mubr.f32.mxu0 0.0
        %502 = vmatmul.mubr.f32.gmra.mrb[0].mxu0 %v354
        %v503 = vpop.f32.mrb[0].mxu0
        %v504 = vadd.f32 %v380, %v503
        %v505 = vpop.f32.mrb[0].mxu0
        %506 = vmatprep.mubr.f32.mxu0 0.0
        %507 = vmatmul.mubr.f32.gmra.mrb[0].mxu0 %v355
        %v508 = vpop.f32.mrb[0].mxu0
        %v509 = vadd.f32 %v380, %v508
        %v510 = vpop.f32.mrb[0].mxu0
        %511 = vmatprep.mubr.f32.mxu0 0.0
        %512 = vmatmul.mubr.f32.gmra.mrb[0].mxu0 %v356
        %v513 = vpop.f32.mrb[0].mxu0
        %v514 = vadd.f32 %v380, %v513
        %v515 = vpop.f32.mrb[0].mxu0
        %516 = vmatprep.mubr.f32.mxu0 0.0
        %517 = vmatmul.mubr.f32.gmra.mrb[0].mxu0 %v357
        %v518 = vpop.f32.mrb[0].mxu0
        %v519 = vadd.f32 %v380, %v518
        %v520 = vpop.f32.mrb[0].mxu0
        %521 = vmatprep.mubr.f32.mxu0 0.0
        %522 = vmatmul.mubr.f32.gmra.mrb[0].mxu0 %v358
        %v523 = vpop.f32.mrb[0].mxu0
        %v524 = vadd.f32 %v380, %v523
        %v525 = vpop.f32.mrb[0].mxu0
        %526 = vdwg.mxu0
        %v527 = vld [vmem:[#allocation7] sm:$0xff]
        %v528 = vld [vmem:[#allocation7 + $0x8] sm:$0xff]
        %v529 = vld [vmem:[#allocation7 + $0x10] sm:$0xff]
        %v530 = vld [vmem:[#allocation7 + $0x18] sm:$0xff]
        %v531 = vld [vmem:[#allocation7 + $0x20] sm:$0xff]
        %v532 = vld [vmem:[#allocation7 + $0x28] sm:$0xff]
        %v533 = vld [vmem:[#allocation7 + $0x30] sm:$0xff]
        %v534 = vld [vmem:[#allocation7 + $0x38] sm:$0xff]
        %v535 = vld [vmem:[#allocation7 + $0x40] sm:$0xff]
        %v536 = vld [vmem:[#allocation7 + $0x48] sm:$0xff]
        %v537 = vld [vmem:[#allocation7 + $0x50] sm:$0xff]
        %v538 = vld [vmem:[#allocation7 + $0x58] sm:$0xff]
        %v539 = vld [vmem:[#allocation7 + $0x60] sm:$0xff]
        %v540 = vld [vmem:[#allocation7 + $0x68] sm:$0xff]
        %v541 = vld [vmem:[#allocation7 + $0x70] sm:$0xff]
        %v542 = vld [vmem:[#allocation7 + $0x78] sm:$0xff]
        %v543 = vld [vmem:[%s4] sm:$0x1]
        %v545 = vlaneseq
        %v546 = vshrl.u32 %v545, 7
        %v547 = vsub.s32 0, %v546
        %v548 = vrot.slane %v543, %v547
        %550 = vmatprep.subr.mxu0 0.0
        %551 = vmatpush1.msra.mxu0 %v527
        %552 = vmatprep.subr.mxu0 0.0
        %553 = vmatpush1.msra.mxu0 %v528
        %554 = vmatprep.subr.mxu0 0.0
        %555 = vmatpush1.msra.mxu0 %v529
        %556 = vmatprep.subr.mxu0 0.0
        %557 = vmatpush1.msra.mxu0 %v530
        %558 = vmatprep.subr.mxu0 0.0
        %559 = vmatpush1.msra.mxu0 %v531
        %560 = vmatprep.subr.mxu0 0.0
        %561 = vmatpush1.msra.mxu0 %v532
        %562 = vmatprep.subr.mxu0 0.0
        %563 = vmatpush1.msra.mxu0 %v533
        %564 = vmatprep.subr.mxu0 0.0
        %565 = vmatpush1.msra.mxu0 %v534
        %566 = vmatprep.subr.mxu0 0.0
        %567 = vmatpush1.msra.mxu0 %v535
        %568 = vmatprep.subr.mxu0 0.0
        %569 = vmatpush1.msra.mxu0 %v536
        %570 = vmatprep.subr.mxu0 0.0
        %571 = vmatpush1.msra.mxu0 %v537
        %572 = vmatprep.subr.mxu0 0.0
        %573 = vmatpush1.msra.mxu0 %v538
        %574 = vmatprep.subr.mxu0 0.0
        %575 = vmatpush1.msra.mxu0 %v539
        %576 = vmatprep.subr.mxu0 0.0
        %577 = vmatpush1.msra.mxu0 %v540
        %578 = vmatprep.subr.mxu0 0.0
        %579 = vmatpush1.msra.mxu0 %v541
        %580 = vmatprep.subr.mxu0 0.0
        %581 = vmatpush1.msra.mxu0 %v542
        %582 = vmatprep.subr.mxu0 0.0
        %583 = vmatpush1.msra.mxu0 0.0
        %584 = vmatprep.subr.mxu0 0.0
        %585 = vmatpush1.msra.mxu0 0.0
        %586 = vmatprep.subr.mxu0 0.0
        %587 = vmatpush1.msra.mxu0 0.0
        %588 = vmatprep.subr.mxu0 0.0
        %589 = vmatpush1.msra.mxu0 0.0
        %590 = vmatprep.subr.mxu0 0.0
        %591 = vmatpush1.msra.mxu0 0.0
        %592 = vmatprep.subr.mxu0 0.0
        %593 = vmatpush1.msra.mxu0 0.0
        %594 = vmatprep.subr.mxu0 0.0
        %595 = vmatpush1.msra.mxu0 0.0
        %596 = vmatprep.subr.mxu0 0.0
        %597 = vmatpush1.msra.mxu0 0.0
        %598 = vmatprep.subr.mxu0 0.0
        %599 = vmatpush1.msra.mxu0 0.0
        %600 = vmatprep.subr.mxu0 0.0
        %601 = vmatpush1.msra.mxu0 0.0
        %602 = vmatprep.subr.mxu0 0.0
        %603 = vmatpush1.msra.mxu0 0.0
        %604 = vmatprep.subr.mxu0 0.0
        %605 = vmatpush1.msra.mxu0 0.0
        %606 = vmatprep.subr.mxu0 0.0
        %607 = vmatpush1.msra.mxu0 0.0
        %608 = vmatprep.subr.mxu0 0.0
        %609 = vmatpush1.msra.mxu0 0.0
        %610 = vmatprep.subr.mxu0 0.0
        %611 = vmatpush1.msra.mxu0 0.0
        %612 = vmatprep.subr.mxu0 0.0
        %613 = vmatpush1.msra.mxu0 0.0
        %614 = vmatprep.mubr.f32.mxu0 0.0
        %615 = vmatmul.mubr.f32.gmra.mrb[0].mxu0 %v449
        %v616 = vpop.f32.mrb[0].mxu0
        %v617 = vadd.f32 %v548, %v616
        %v618 = vpop.f32.mrb[0].mxu0
        %619 = vmatprep.mubr.f32.mxu0 0.0
        %620 = vmatmul.mubr.f32.gmra.mrb[0].mxu0 %v454
        %v621 = vpop.f32.mrb[0].mxu0
        %v622 = vadd.f32 %v548, %v621
        %v623 = vpop.f32.mrb[0].mxu0
        %624 = vmatprep.mubr.f32.mxu0 0.0
        %625 = vmatmul.mubr.f32.gmra.mrb[0].mxu0 %v459
        %v626 = vpop.f32.mrb[0].mxu0
        %v627 = vadd.f32 %v548, %v626
        %v628 = vpop.f32.mrb[0].mxu0
        %629 = vmatprep.mubr.f32.mxu0 0.0
        %630 = vmatmul.mubr.f32.gmra.mrb[0].mxu0 %v464
        %v631 = vpop.f32.mrb[0].mxu0
        %v632 = vadd.f32 %v548, %v631
        %v633 = vpop.f32.mrb[0].mxu0
        %634 = vmatprep.mubr.f32.mxu0 0.0
        %635 = vmatmul.mubr.f32.gmra.mrb[0].mxu0 %v469
        %v636 = vpop.f32.mrb[0].mxu0
        %v637 = vadd.f32 %v548, %v636
        %v638 = vpop.f32.mrb[0].mxu0
        %639 = vmatprep.mubr.f32.mxu0 0.0
        %640 = vmatmul.mubr.f32.gmra.mrb[0].mxu0 %v474
        %v641 = vpop.f32.mrb[0].mxu0
        %v642 = vadd.f32 %v548, %v641
        %v643 = vpop.f32.mrb[0].mxu0
        %644 = vmatprep.mubr.f32.mxu0 0.0
        %645 = vmatmul.mubr.f32.gmra.mrb[0].mxu0 %v479
        %v646 = vpop.f32.mrb[0].mxu0
        %v647 = vadd.f32 %v548, %v646
        %v648 = vpop.f32.mrb[0].mxu0
        %649 = vmatprep.mubr.f32.mxu0 0.0
        %650 = vmatmul.mubr.f32.gmra.mrb[0].mxu0 %v484
        %v651 = vpop.f32.mrb[0].mxu0
        %v652 = vadd.f32 %v548, %v651
        %v653 = vpop.f32.mrb[0].mxu0
        %654 = vmatprep.mubr.f32.mxu0 0.0
        %655 = vmatmul.mubr.f32.gmra.mrb[0].mxu0 %v489
        %v656 = vpop.f32.mrb[0].mxu0
        %v657 = vadd.f32 %v548, %v656
        %v658 = vpop.f32.mrb[0].mxu0
        %659 = vmatprep.mubr.f32.mxu0 0.0
        %660 = vmatmul.mubr.f32.gmra.mrb[0].mxu0 %v494
        %v661 = vpop.f32.mrb[0].mxu0
        %v662 = vadd.f32 %v548, %v661
        %v663 = vpop.f32.mrb[0].mxu0
        %664 = vmatprep.mubr.f32.mxu0 0.0
        %665 = vmatmul.mubr.f32.gmra.mrb[0].mxu0 %v499
        %v666 = vpop.f32.mrb[0].mxu0
        %v667 = vadd.f32 %v548, %v666
        %v668 = vpop.f32.mrb[0].mxu0
        %669 = vmatprep.mubr.f32.mxu0 0.0
        %670 = vmatmul.mubr.f32.gmra.mrb[0].mxu0 %v504
        %v671 = vpop.f32.mrb[0].mxu0
        %v672 = vadd.f32 %v548, %v671
        %v673 = vpop.f32.mrb[0].mxu0
        %674 = vmatprep.mubr.f32.mxu0 0.0
        %675 = vmatmul.mubr.f32.gmra.mrb[0].mxu0 %v509
        %v676 = vpop.f32.mrb[0].mxu0
        %v677 = vadd.f32 %v548, %v676
        %v678 = vpop.f32.mrb[0].mxu0
        %679 = vmatprep.mubr.f32.mxu0 0.0
        %680 = vmatmul.mubr.f32.gmra.mrb[0].mxu0 %v514
        %v681 = vpop.f32.mrb[0].mxu0
        %v682 = vadd.f32 %v548, %v681
        %v683 = vpop.f32.mrb[0].mxu0
        %684 = vmatprep.mubr.f32.mxu0 0.0
        %685 = vmatmul.mubr.f32.gmra.mrb[0].mxu0 %v519
        %v686 = vpop.f32.mrb[0].mxu0
        %v687 = vadd.f32 %v548, %v686
        %v688 = vpop.f32.mrb[0].mxu0
        %689 = vmatprep.mubr.f32.mxu0 0.0
        %690 = vmatmul.mubr.f32.gmra.mrb[0].mxu0 %v524
        %v691 = vpop.f32.mrb[0].mxu0
        %v692 = vadd.f32 %v548, %v691
        %v693 = vpop.f32.mrb[0].mxu0
        %694 = vdwg.mxu0
        %v695 = vtanh.pop %v617
        %v696 = vtanh.pop %v622
        %v697 = vtanh.pop %v627
        %v698 = vtanh.pop %v632
        %v699 = vtanh.pop %v637
        %v700 = vtanh.pop %v642
        %v701 = vtanh.pop %v647
        %v702 = vtanh.pop %v652
        %v703 = vtanh.pop %v657
        %v704 = vtanh.pop %v662
        %v705 = vtanh.pop %v667
        %v706 = vtanh.pop %v672
        %v707 = vtanh.pop %v677
        %v708 = vtanh.pop %v682
        %v709 = vtanh.pop %v687
        %v710 = vtanh.pop %v692
        %s711 = scalar_lea.vmem [#allocation7], 128
        %v712 = vld [vmem:[%s711] sm:$0xff]
        %v713 = vld [vmem:[%s711 + $0x8] sm:$0xff]
        %v714 = vld [vmem:[%s711 + $0x10] sm:$0xff]
        %v715 = vld [vmem:[%s711 + $0x18] sm:$0xff]
        %v716 = vld [vmem:[%s711 + $0x20] sm:$0xff]
        %v717 = vld [vmem:[%s711 + $0x28] sm:$0xff]
        %v718 = vld [vmem:[%s711 + $0x30] sm:$0xff]
        %v719 = vld [vmem:[%s711 + $0x38] sm:$0xff]
        %v720 = vld [vmem:[%s711 + $0x40] sm:$0xff]
        %v721 = vld [vmem:[%s711 + $0x48] sm:$0xff]
        %v722 = vld [vmem:[%s711 + $0x50] sm:$0xff]
        %v723 = vld [vmem:[%s711 + $0x58] sm:$0xff]
        %v724 = vld [vmem:[%s711 + $0x60] sm:$0xff]
        %v725 = vld [vmem:[%s711 + $0x68] sm:$0xff]
        %v726 = vld [vmem:[%s711 + $0x70] sm:$0xff]
        %v727 = vld [vmem:[%s711 + $0x78] sm:$0xff]
        %s728 = scalar_lea.vmem %s4, 1
        %v729 = vld [vmem:[%s728] sm:$0x1]
        %v731 = vlaneseq
        %v732 = vshrl.u32 %v731, 7
        %v733 = vsub.s32 0, %v732
        %v734 = vrot.slane %v729, %v733
        %736 = vmatprep.subr.mxu0 0.0
        %737 = vmatpush1.msra.mxu0 %v712
        %738 = vmatprep.subr.mxu0 0.0
        %739 = vmatpush1.msra.mxu0 %v713
        %740 = vmatprep.subr.mxu0 0.0
        %741 = vmatpush1.msra.mxu0 %v714
        %742 = vmatprep.subr.mxu0 0.0
        %743 = vmatpush1.msra.mxu0 %v715
        %744 = vmatprep.subr.mxu0 0.0
        %745 = vmatpush1.msra.mxu0 %v716
        %746 = vmatprep.subr.mxu0 0.0
        %747 = vmatpush1.msra.mxu0 %v717
        %748 = vmatprep.subr.mxu0 0.0
        %749 = vmatpush1.msra.mxu0 %v718
        %750 = vmatprep.subr.mxu0 0.0
        %751 = vmatpush1.msra.mxu0 %v719
        %752 = vmatprep.subr.mxu0 0.0
        %753 = vmatpush1.msra.mxu0 %v720
        %754 = vmatprep.subr.mxu0 0.0
        %755 = vmatpush1.msra.mxu0 %v721
        %756 = vmatprep.subr.mxu0 0.0
        %757 = vmatpush1.msra.mxu0 %v722
        %758 = vmatprep.subr.mxu0 0.0
        %759 = vmatpush1.msra.mxu0 %v723
        %760 = vmatprep.subr.mxu0 0.0
        %761 = vmatpush1.msra.mxu0 %v724
        %762 = vmatprep.subr.mxu0 0.0
        %763 = vmatpush1.msra.mxu0 %v725
        %764 = vmatprep.subr.mxu0 0.0
        %765 = vmatpush1.msra.mxu0 %v726
        %766 = vmatprep.subr.mxu0 0.0
        %767 = vmatpush1.msra.mxu0 %v727
        %768 = vmatprep.subr.mxu0 0.0
        %769 = vmatpush1.msra.mxu0 0.0
        %770 = vmatprep.subr.mxu0 0.0
        %771 = vmatpush1.msra.mxu0 0.0
        %772 = vmatprep.subr.mxu0 0.0
        %773 = vmatpush1.msra.mxu0 0.0
        %774 = vmatprep.subr.mxu0 0.0
        %775 = vmatpush1.msra.mxu0 0.0
        %776 = vmatprep.subr.mxu0 0.0
        %777 = vmatpush1.msra.mxu0 0.0
        %778 = vmatprep.subr.mxu0 0.0
        %779 = vmatpush1.msra.mxu0 0.0
        %780 = vmatprep.subr.mxu0 0.0
        %781 = vmatpush1.msra.mxu0 0.0
        %782 = vmatprep.subr.mxu0 0.0
        %783 = vmatpush1.msra.mxu0 0.0
        %784 = vmatprep.subr.mxu0 0.0
        %785 = vmatpush1.msra.mxu0 0.0
        %786 = vmatprep.subr.mxu0 0.0
        %787 = vmatpush1.msra.mxu0 0.0
        %788 = vmatprep.subr.mxu0 0.0
        %789 = vmatpush1.msra.mxu0 0.0
        %790 = vmatprep.subr.mxu0 0.0
        %791 = vmatpush1.msra.mxu0 0.0
        %792 = vmatprep.subr.mxu0 0.0
        %793 = vmatpush1.msra.mxu0 0.0
        %794 = vmatprep.subr.mxu0 0.0
        %795 = vmatpush1.msra.mxu0 0.0
        %796 = vmatprep.subr.mxu0 0.0
        %797 = vmatpush1.msra.mxu0 0.0
        %798 = vmatprep.subr.mxu0 0.0
        %799 = vmatpush1.msra.mxu0 0.0
        %800 = vmatprep.mubr.f32.mxu0 0.0
        %801 = vmatmul.mubr.f32.gmra.mrb[0].mxu0 %v695
        %v802 = vpop.f32.mrb[0].mxu0
        %v803 = vadd.f32 %v734, %v802
        %v804 = vpop.f32.mrb[0].mxu0
        %805 = vmatprep.mubr.f32.mxu0 0.0
        %806 = vmatmul.mubr.f32.gmra.mrb[0].mxu0 %v696
        %v807 = vpop.f32.mrb[0].mxu0
        %v808 = vadd.f32 %v734, %v807
        %v809 = vpop.f32.mrb[0].mxu0
        %810 = vmatprep.mubr.f32.mxu0 0.0
        %811 = vmatmul.mubr.f32.gmra.mrb[0].mxu0 %v697
        %v812 = vpop.f32.mrb[0].mxu0
        %v813 = vadd.f32 %v734, %v812
        %v814 = vpop.f32.mrb[0].mxu0
        %815 = vmatprep.mubr.f32.mxu0 0.0
        %816 = vmatmul.mubr.f32.gmra.mrb[0].mxu0 %v698
        %v817 = vpop.f32.mrb[0].mxu0
        %v818 = vadd.f32 %v734, %v817
        %v819 = vpop.f32.mrb[0].mxu0
        %820 = vmatprep.mubr.f32.mxu0 0.0
        %821 = vmatmul.mubr.f32.gmra.mrb[0].mxu0 %v699
        %v822 = vpop.f32.mrb[0].mxu0
        %v823 = vadd.f32 %v734, %v822
        %v824 = vpop.f32.mrb[0].mxu0
        %825 = vmatprep.mubr.f32.mxu0 0.0
        %826 = vmatmul.mubr.f32.gmra.mrb[0].mxu0 %v700
        %v827 = vpop.f32.mrb[0].mxu0
        %v828 = vadd.f32 %v734, %v827
        %v829 = vpop.f32.mrb[0].mxu0
        %830 = vmatprep.mubr.f32.mxu0 0.0
        %831 = vmatmul.mubr.f32.gmra.mrb[0].mxu0 %v701
        %v832 = vpop.f32.mrb[0].mxu0
        %v833 = vadd.f32 %v734, %v832
        %v834 = vpop.f32.mrb[0].mxu0
        %835 = vmatprep.mubr.f32.mxu0 0.0
        %836 = vmatmul.mubr.f32.gmra.mrb[0].mxu0 %v702
        %v837 = vpop.f32.mrb[0].mxu0
        %v838 = vadd.f32 %v734, %v837
        %v839 = vpop.f32.mrb[0].mxu0
        %840 = vmatprep.mubr.f32.mxu0 0.0
        %841 = vmatmul.mubr.f32.gmra.mrb[0].mxu0 %v703
        %v842 = vpop.f32.mrb[0].mxu0
        %v843 = vadd.f32 %v734, %v842
        %v844 = vpop.f32.mrb[0].mxu0
        %845 = vmatprep.mubr.f32.mxu0 0.0
        %846 = vmatmul.mubr.f32.gmra.mrb[0].mxu0 %v704
        %v847 = vpop.f32.mrb[0].mxu0
        %v848 = vadd.f32 %v734, %v847
        %v849 = vpop.f32.mrb[0].mxu0
        %850 = vmatprep.mubr.f32.mxu0 0.0
        %851 = vmatmul.mubr.f32.gmra.mrb[0].mxu0 %v705
        %v852 = vpop.f32.mrb[0].mxu0
        %v853 = vadd.f32 %v734, %v852
        %v854 = vpop.f32.mrb[0].mxu0
        %855 = vmatprep.mubr.f32.mxu0 0.0
        %856 = vmatmul.mubr.f32.gmra.mrb[0].mxu0 %v706
        %v857 = vpop.f32.mrb[0].mxu0
        %v858 = vadd.f32 %v734, %v857
        %v859 = vpop.f32.mrb[0].mxu0
        %860 = vmatprep.mubr.f32.mxu0 0.0
        %861 = vmatmul.mubr.f32.gmra.mrb[0].mxu0 %v707
        %v862 = vpop.f32.mrb[0].mxu0
        %v863 = vadd.f32 %v734, %v862
        %v864 = vpop.f32.mrb[0].mxu0
        %865 = vmatprep.mubr.f32.mxu0 0.0
        %866 = vmatmul.mubr.f32.gmra.mrb[0].mxu0 %v708
        %v867 = vpop.f32.mrb[0].mxu0
        %v868 = vadd.f32 %v734, %v867
        %v869 = vpop.f32.mrb[0].mxu0
        %870 = vmatprep.mubr.f32.mxu0 0.0
        %871 = vmatmul.mubr.f32.gmra.mrb[0].mxu0 %v709
        %v872 = vpop.f32.mrb[0].mxu0
        %v873 = vadd.f32 %v734, %v872
        %v874 = vpop.f32.mrb[0].mxu0
        %875 = vmatprep.mubr.f32.mxu0 0.0
        %876 = vmatmul.mubr.f32.gmra.mrb[0].mxu0 %v710
        %v877 = vpop.f32.mrb[0].mxu0
        %v878 = vadd.f32 %v734, %v877
        %v879 = vpop.f32.mrb[0].mxu0
        %880 = vdwg.mxu0
        %v881 = vtanh.pop %v803
        %v882 = vtanh.pop %v808
        %v883 = vtanh.pop %v813
        %v884 = vtanh.pop %v818
        %v885 = vtanh.pop %v823
        %v886 = vtanh.pop %v828
        %v887 = vtanh.pop %v833
        %v888 = vtanh.pop %v838
        %v889 = vtanh.pop %v843
        %v890 = vtanh.pop %v848
        %v891 = vtanh.pop %v853
        %v892 = vtanh.pop %v858
        %v893 = vtanh.pop %v863
        %v894 = vtanh.pop %v868
        %v895 = vtanh.pop %v873
        %v896 = vtanh.pop %v878
        %v897 = vld [vmem:[#allocation8] sm:$0xff]
        %v898 = vld [vmem:[#allocation8 + $0x8] sm:$0xff]
        %v899 = vld [vmem:[#allocation8 + $0x10] sm:$0xff]
        %v900 = vld [vmem:[#allocation8 + $0x18] sm:$0xff]
        %v901 = vld [vmem:[#allocation8 + $0x20] sm:$0xff]
        %v902 = vld [vmem:[#allocation8 + $0x28] sm:$0xff]
        %v903 = vld [vmem:[#allocation8 + $0x30] sm:$0xff]
        %v904 = vld [vmem:[#allocation8 + $0x38] sm:$0xff]
        %v905 = vld [vmem:[#allocation8 + $0x40] sm:$0xff]
        %v906 = vld [vmem:[#allocation8 + $0x48] sm:$0xff]
        %v907 = vld [vmem:[#allocation8 + $0x50] sm:$0xff]
        %v908 = vld [vmem:[#allocation8 + $0x58] sm:$0xff]
        %v909 = vld [vmem:[#allocation8 + $0x60] sm:$0xff]
        %v910 = vld [vmem:[#allocation8 + $0x68] sm:$0xff]
        %v911 = vld [vmem:[#allocation8 + $0x70] sm:$0xff]
        %v912 = vld [vmem:[#allocation8 + $0x78] sm:$0xff]
        %v913 = vld [vmem:[%s6] sm:$0x1]
        %v915 = vlaneseq
        %v916 = vshrl.u32 %v915, 7
        %v917 = vsub.s32 0, %v916
        %v918 = vrot.slane %v913, %v917
        %920 = vmatprep.subr.mxu0 0.0
        %921 = vmatpush1.msra.mxu0 %v897
        %922 = vmatprep.subr.mxu0 0.0
        %923 = vmatpush1.msra.mxu0 %v898
        %924 = vmatprep.subr.mxu0 0.0
        %925 = vmatpush1.msra.mxu0 %v899
        %926 = vmatprep.subr.mxu0 0.0
        %927 = vmatpush1.msra.mxu0 %v900
        %928 = vmatprep.subr.mxu0 0.0
        %929 = vmatpush1.msra.mxu0 %v901
        %930 = vmatprep.subr.mxu0 0.0
        %931 = vmatpush1.msra.mxu0 %v902
        %932 = vmatprep.subr.mxu0 0.0
        %933 = vmatpush1.msra.mxu0 %v903
        %934 = vmatprep.subr.mxu0 0.0
        %935 = vmatpush1.msra.mxu0 %v904
        %936 = vmatprep.subr.mxu0 0.0
        %937 = vmatpush1.msra.mxu0 %v905
        %938 = vmatprep.subr.mxu0 0.0
        %939 = vmatpush1.msra.mxu0 %v906
        %940 = vmatprep.subr.mxu0 0.0
        %941 = vmatpush1.msra.mxu0 %v907
        %942 = vmatprep.subr.mxu0 0.0
        %943 = vmatpush1.msra.mxu0 %v908
        %944 = vmatprep.subr.mxu0 0.0
        %945 = vmatpush1.msra.mxu0 %v909
        %946 = vmatprep.subr.mxu0 0.0
        %947 = vmatpush1.msra.mxu0 %v910
        %948 = vmatprep.subr.mxu0 0.0
        %949 = vmatpush1.msra.mxu0 %v911
        %950 = vmatprep.subr.mxu0 0.0
        %951 = vmatpush1.msra.mxu0 %v912
        %952 = vmatprep.subr.mxu0 0.0
        %953 = vmatpush1.msra.mxu0 0.0
        %954 = vmatprep.subr.mxu0 0.0
        %955 = vmatpush1.msra.mxu0 0.0
        %956 = vmatprep.subr.mxu0 0.0
        %957 = vmatpush1.msra.mxu0 0.0
        %958 = vmatprep.subr.mxu0 0.0
        %959 = vmatpush1.msra.mxu0 0.0
        %960 = vmatprep.subr.mxu0 0.0
        %961 = vmatpush1.msra.mxu0 0.0
        %962 = vmatprep.subr.mxu0 0.0
        %963 = vmatpush1.msra.mxu0 0.0
        %964 = vmatprep.subr.mxu0 0.0
        %965 = vmatpush1.msra.mxu0 0.0
        %966 = vmatprep.subr.mxu0 0.0
        %967 = vmatpush1.msra.mxu0 0.0
        %968 = vmatprep.subr.mxu0 0.0
        %969 = vmatpush1.msra.mxu0 0.0
        %970 = vmatprep.subr.mxu0 0.0
        %971 = vmatpush1.msra.mxu0 0.0
        %972 = vmatprep.subr.mxu0 0.0
        %973 = vmatpush1.msra.mxu0 0.0
        %974 = vmatprep.subr.mxu0 0.0
        %975 = vmatpush1.msra.mxu0 0.0
        %976 = vmatprep.subr.mxu0 0.0
        %977 = vmatpush1.msra.mxu0 0.0
        %978 = vmatprep.subr.mxu0 0.0
        %979 = vmatpush1.msra.mxu0 0.0
        %980 = vmatprep.subr.mxu0 0.0
        %981 = vmatpush1.msra.mxu0 0.0
        %982 = vmatprep.subr.mxu0 0.0
        %983 = vmatpush1.msra.mxu0 0.0
        %984 = vmatprep.mubr.f32.mxu0 0.0
        %985 = vmatmul.mubr.f32.gmra.mrb[0].mxu0 %v881
        %v986 = vpop.f32.mrb[0].mxu0
        %v987 = vadd.f32 %v918, %v986
        %v988 = vpop.f32.mrb[0].mxu0
        %989 = vmatprep.mubr.f32.mxu0 0.0
        %990 = vmatmul.mubr.f32.gmra.mrb[0].mxu0 %v882
        %v991 = vpop.f32.mrb[0].mxu0
        %v992 = vadd.f32 %v918, %v991
        %v993 = vpop.f32.mrb[0].mxu0
        %994 = vmatprep.mubr.f32.mxu0 0.0
        %995 = vmatmul.mubr.f32.gmra.mrb[0].mxu0 %v883
        %v996 = vpop.f32.mrb[0].mxu0
        %v997 = vadd.f32 %v918, %v996
        %v998 = vpop.f32.mrb[0].mxu0
        %999 = vmatprep.mubr.f32.mxu0 0.0
        %1000 = vmatmul.mubr.f32.gmra.mrb[0].mxu0 %v884
        %v1001 = vpop.f32.mrb[0].mxu0
        %v1002 = vadd.f32 %v918, %v1001
        %v1003 = vpop.f32.mrb[0].mxu0
        %1004 = vmatprep.mubr.f32.mxu0 0.0
        %1005 = vmatmul.mubr.f32.gmra.mrb[0].mxu0 %v885
        %v1006 = vpop.f32.mrb[0].mxu0
        %v1007 = vadd.f32 %v918, %v1006
        %v1008 = vpop.f32.mrb[0].mxu0
        %1009 = vmatprep.mubr.f32.mxu0 0.0
        %1010 = vmatmul.mubr.f32.gmra.mrb[0].mxu0 %v886
        %v1011 = vpop.f32.mrb[0].mxu0
        %v1012 = vadd.f32 %v918, %v1011
        %v1013 = vpop.f32.mrb[0].mxu0
        %1014 = vmatprep.mubr.f32.mxu0 0.0
        %1015 = vmatmul.mubr.f32.gmra.mrb[0].mxu0 %v887
        %v1016 = vpop.f32.mrb[0].mxu0
        %v1017 = vadd.f32 %v918, %v1016
        %v1018 = vpop.f32.mrb[0].mxu0
        %1019 = vmatprep.mubr.f32.mxu0 0.0
        %1020 = vmatmul.mubr.f32.gmra.mrb[0].mxu0 %v888
        %v1021 = vpop.f32.mrb[0].mxu0
        %v1022 = vadd.f32 %v918, %v1021
        %v1023 = vpop.f32.mrb[0].mxu0
        %1024 = vmatprep.mubr.f32.mxu0 0.0
        %1025 = vmatmul.mubr.f32.gmra.mrb[0].mxu0 %v889
        %v1026 = vpop.f32.mrb[0].mxu0
        %v1027 = vadd.f32 %v918, %v1026
        %v1028 = vpop.f32.mrb[0].mxu0
        %1029 = vmatprep.mubr.f32.mxu0 0.0
        %1030 = vmatmul.mubr.f32.gmra.mrb[0].mxu0 %v890
        %v1031 = vpop.f32.mrb[0].mxu0
        %v1032 = vadd.f32 %v918, %v1031
        %v1033 = vpop.f32.mrb[0].mxu0
        %1034 = vmatprep.mubr.f32.mxu0 0.0
        %1035 = vmatmul.mubr.f32.gmra.mrb[0].mxu0 %v891
        %v1036 = vpop.f32.mrb[0].mxu0
        %v1037 = vadd.f32 %v918, %v1036
        %v1038 = vpop.f32.mrb[0].mxu0
        %1039 = vmatprep.mubr.f32.mxu0 0.0
        %1040 = vmatmul.mubr.f32.gmra.mrb[0].mxu0 %v892
        %v1041 = vpop.f32.mrb[0].mxu0
        %v1042 = vadd.f32 %v918, %v1041
        %v1043 = vpop.f32.mrb[0].mxu0
        %1044 = vmatprep.mubr.f32.mxu0 0.0
        %1045 = vmatmul.mubr.f32.gmra.mrb[0].mxu0 %v893
        %v1046 = vpop.f32.mrb[0].mxu0
        %v1047 = vadd.f32 %v918, %v1046
        %v1048 = vpop.f32.mrb[0].mxu0
        %1049 = vmatprep.mubr.f32.mxu0 0.0
        %1050 = vmatmul.mubr.f32.gmra.mrb[0].mxu0 %v894
        %v1051 = vpop.f32.mrb[0].mxu0
        %v1052 = vadd.f32 %v918, %v1051
        %v1053 = vpop.f32.mrb[0].mxu0
        %1054 = vmatprep.mubr.f32.mxu0 0.0
        %1055 = vmatmul.mubr.f32.gmra.mrb[0].mxu0 %v895
        %v1056 = vpop.f32.mrb[0].mxu0
        %v1057 = vadd.f32 %v918, %v1056
        %v1058 = vpop.f32.mrb[0].mxu0
        %1059 = vmatprep.mubr.f32.mxu0 0.0
        %1060 = vmatmul.mubr.f32.gmra.mrb[0].mxu0 %v896
        %v1061 = vpop.f32.mrb[0].mxu0
        %v1062 = vadd.f32 %v918, %v1061
        %v1063 = vpop.f32.mrb[0].mxu0
        %1064 = vdwg.mxu0
        %1065 = vst [vmem:[%s340] sm:$0xff] %v987
        %1066 = vst [vmem:[%s340 + $0x8] sm:$0xff] %v992
        %1067 = vst [vmem:[%s340 + $0x10] sm:$0xff] %v997
        %1068 = vst [vmem:[%s340 + $0x18] sm:$0xff] %v1002
        %1069 = vst [vmem:[%s340 + $0x20] sm:$0xff] %v1007
        %1070 = vst [vmem:[%s340 + $0x28] sm:$0xff] %v1012
        %1071 = vst [vmem:[%s340 + $0x30] sm:$0xff] %v1017
        %1072 = vst [vmem:[%s340 + $0x38] sm:$0xff] %v1022
        %1073 = vst [vmem:[%s340 + $0x40] sm:$0xff] %v1027
        %1074 = vst [vmem:[%s340 + $0x48] sm:$0xff] %v1032
        %1075 = vst [vmem:[%s340 + $0x50] sm:$0xff] %v1037
        %1076 = vst [vmem:[%s340 + $0x58] sm:$0xff] %v1042
        %1077 = vst [vmem:[%s340 + $0x60] sm:$0xff] %v1047
        %1078 = vst [vmem:[%s340 + $0x68] sm:$0xff] %v1052
        %1079 = vst [vmem:[%s340 + $0x70] sm:$0xff] %v1057
        %1080 = vst [vmem:[%s340 + $0x78] sm:$0xff] %v1062
        %s1081 = sand.u32 %s186, 1
        %s1082 = scalar_lea.sflag [#allocation4], %s1081
        %s1083 = sand.u32 %s186, 1
        %s1084 = smul.addr %s1083, 128
        %s1085 = scalar_lea.vmem [#allocation10], %s1084
        // Predicated region
        $region65: #{tpu_custom_call.1} parent=47 // pred_check
          %p1086 = pneg %p196
        $region66: #{tpu_custom_call.1} parent=47 // pred_check_branch
          %1088 = sbr.rel (%p1086) target = $region68
        $region67: #{tpu_custom_call.1} parent=47 // pred_region
          %s1089 = smul.u32 16, %s26
          %s1091 = ssub.s32 2048, 2048
          %1092 = vsyncadd %s1082, %s1091
          %s1093 = smul.addr %s1089, 128
          %s1094 = scalar_lea.hbm %s7, %s1093
          %s1095 = sshll.u32 %s1085, 4
          %s1096 = int_to_ptr.vmem [resolvable:$true] %s1095
          %1101 = dma.vmem_to_hbm [thread:$0]  %s1096, 2048, %s1094, %s1082, 128, 128, 8
        $region68: #{tpu_custom_call.1} parent=47 // pred_fallthru
          _
      $region48: #{tpu_custom_call.1} parent=5 // pred_fallthru
        _
      %p1102 = scmp.le.s32.totalorder 2, %s21
      // Predicated region
      $region69: #{tpu_custom_call.1} parent=5 // pred_check
        %p1103 = pneg %p1102
      $region70: #{tpu_custom_call.1} parent=5 // pred_check_branch
        %1105 = sbr.rel (%p1103) target = $region72
      $region71: #{tpu_custom_call.1} parent=5 // pred_region
        %s1106 = ssub.s32 %s21, 2
        // Predicated region
        $region73: #{tpu_custom_call.1} parent=71 // pred_check
          %p1107 = pneg %p202
        $region74: #{tpu_custom_call.1} parent=71 // pred_check_branch
          %1109 = sbr.rel (%p1107) target = $region76
        $region75: #{tpu_custom_call.1} parent=71 // pred_region
          %s1110 = sand.u32 %s187, 1
          %s1111 = scalar_lea.sflag [#allocation4], %s1110
          %s1112 = sand.u32 %s187, 1
          %s1113 = smul.addr %s1112, 128
          %s1114 = scalar_lea.vmem [#allocation10], %s1113
          %1115 = dma.done %s1111, 2048
        $region76: #{tpu_custom_call.1} parent=71 // pred_fallthru
          _
      $region72: #{tpu_custom_call.1} parent=5 // pred_fallthru
        _
    $region6: #{tpu_custom_call.1} parent=1 // loop_footer
      %s25 = sadd.s32 1, %s21
    $region7: #{tpu_custom_call.1} parent=1 // loop_footer_branch
      %20 = sbr.rel target = $region3
    $region8: #{tpu_custom_call.1} parent=1 // loop_exit
      _
    %1116 = vsyncpa [#allocation3], 1
    %s1117 = scalar_lea.sflag [#allocation3], 1
    %1118 = vsyncpa %s1117, 1
    %1119 = vsyncpa [#allocation6], 1
    %1120 = vsyncpa [#allocation9], 1
    %1121 = vsyncpa [#allocation4], 1
    %s1122 = scalar_lea.sflag [#allocation4], 1
    %1123 = vsyncpa %s1122, 1

</llo_original>
